<compile_context>
chip_gen: v6e
topology: v6e:2x2x1
jax: 0.10.0
libtpu: 0.0.40
codegen_flags: <defaults>
</compile_context>

<pallas_src>
import functools

import jax
import jax.numpy as jnp
from jax.experimental import pallas as pl
from jax.experimental.pallas import tpu as pltpu


def _round_up(x: int, m: int) -> int:
    return ((x + m - 1) // m) * m


def _gather_block(idx_sref, table_ref, logits_ref):
    """Gather R = logits_ref.shape[0] rows of the VMEM-resident table.

    Static (unrolled) row loop: store offsets are static; only the table row
    index is dynamic (a dynamic sublane slice of the resident table), which is
    the cheapest / best-supported form of in-VMEM gather.
    """
    rows_per_block = logits_ref.shape[0]
    base = pl.program_id(0) * rows_per_block
    for r in range(rows_per_block):
        tok = idx_sref[base + r]                        # SMEM scalar read
        logits_ref[pl.ds(r, 1), :] = table_ref[pl.ds(tok, 1), :]


def _bigram_gather_kernel(idx_sref, table_ref, logits_ref):
    # Inference path: the bigram "forward" without targets is just the gather.
    _gather_block(idx_sref, table_ref, logits_ref)


def _bigram_ce_kernel(n_valid, idx_sref, tgt_ref, table_ref, logits_ref, loss_ref):
    rows_per_block, vocab = logits_ref.shape
    base = pl.program_id(0) * rows_per_block

    # 1) Gather R table rows straight into the logits output block.
    _gather_block(idx_sref, table_ref, logits_ref)
    rows = logits_ref[...]                               # (R, V) f32

    # 2) Fused cross-entropy: stabilized logsumexp minus the target logit.
    m = jnp.max(rows, axis=-1, keepdims=True)            # (R, 1)
    lse = m + jnp.log(jnp.sum(jnp.exp(rows - m), axis=-1, keepdims=True))

    col = jax.lax.broadcasted_iota(jnp.int32, (rows_per_block, vocab), 1)
    tgt = tgt_ref[...]                                    # (R, 1) int32 VMEM block
    tgt_logit = jnp.sum(jnp.where(col == tgt, rows, 0.0), axis=-1, keepdims=True)

    per_row = lse - tgt_logit                             # (R, 1) per-row CE

    # 3) Mask padded rows (global row id >= N) and emit one partial sum per
    #    grid step; the wrapper divides by the global N.
    row_id = base + jax.lax.broadcasted_iota(jnp.int32, (rows_per_block, 1), 0)
    per_row = jnp.where(row_id < n_valid, per_row, 0.0)
    loss_ref[...] = jnp.sum(per_row).reshape(1, 1, 1)


def bigram_forward(idx, table, targets=None, *, rows_per_block=128):
    """Mirrors BigramLanguageModel.forward.

    idx:     (B, T) int token ids
    table:   (V, V) float32 embedding table (row i = logits for token i)
    targets: (B, T) int or None
    Returns (logits, loss): logits is (B, T, V) when targets is None, else
    (B*T, V) (matching the PyTorch .view); loss is a scalar or None.
    """
    B, T = idx.shape
    V = table.shape[0]
    N = B * T

    # R tokens per grid step: multiple of 8 (sublane-dense output blocks),
    # capped so the static in-kernel gather unroll stays small.
    R = min(int(rows_per_block), _round_up(N, 8))
    R = _round_up(R, 8)
    N_pad = _round_up(N, R)
    G = N_pad // R

    idx_flat = idx.reshape(N).astype(jnp.int32)
    idx_pad = jnp.pad(idx_flat, (0, N_pad - N))           # pad rows gather row 0 (masked later)
    table = table.astype(jnp.float32)

    # VMEM budget: resident table (x2 buffers) + double-buffered (R,V) logits
    # blocks + small targets/loss blocks + headroom.  Raising the scoped limit
    # keeps the table-resident path available on v5e's 16 MiB default; 32 MiB
    # is within every generation's physical VMEM.
    # TODO(synk): for very large V whose f32 table cannot be VMEM-resident
    # (generation-specific threshold, smallest on v7x's 64 MiB), fall back to a
    # grouped manual-DMA gather (memory_space=pl.ANY table + make_async_copy).
    vmem_needed = 2 * V * V * 4 + 4 * R * V * 4 + 2 * R * 128 * 4 + (1 << 20)
    vmem_limit = min(100 * 1024 * 1024, max(vmem_needed, 32 * 1024 * 1024))
    cparams = pltpu.CompilerParams(
        dimension_semantics=("parallel",),
        vmem_limit_bytes=vmem_limit,
    )

    # Constant index_map -> the table block is fetched once and stays resident.
    table_spec = pl.BlockSpec((V, V), lambda i, idx_ref: (0, 0))
    logits_spec = pl.BlockSpec((R, V), lambda i, idx_ref: (i, 0))

    if targets is None:
        logits_pad = pl.pallas_call(
            _bigram_gather_kernel,
            out_shape=jax.ShapeDtypeStruct((N_pad, V), jnp.float32),
            grid_spec=pltpu.PrefetchScalarGridSpec(
                num_scalar_prefetch=1,
                grid=(G,),
                in_specs=[table_spec],
                out_specs=logits_spec,
            ),
            compiler_params=cparams,
        )(idx_pad, table)
        return logits_pad[:N].reshape(B, T, V), None

    tgt_flat = targets.reshape(N).astype(jnp.int32)
    tgt_pad = jnp.pad(tgt_flat, (0, N_pad - N)).reshape(N_pad, 1)

    logits_pad, partial_loss = pl.pallas_call(
        functools.partial(_bigram_ce_kernel, N),
        out_shape=(
            jax.ShapeDtypeStruct((N_pad, V), jnp.float32),
            jax.ShapeDtypeStruct((G, 1, 1), jnp.float32),
        ),
        grid_spec=pltpu.PrefetchScalarGridSpec(
            num_scalar_prefetch=1,
            grid=(G,),
            in_specs=[
                pl.BlockSpec((R, 1), lambda i, idx_ref: (i, 0)),   # targets
                table_spec,                                        # resident table
            ],
            out_specs=(
                logits_spec,
                pl.BlockSpec((1, 1, 1), lambda i, idx_ref: (i, 0, 0)),  # partial loss
            ),
        ),
        compiler_params=cparams,
    )(idx_pad, tgt_pad, table)

    logits = logits_pad[:N]
    # Mean over the *global* N = B*T rows (matches F.cross_entropy reduction).
    loss = jnp.sum(partial_loss) / jnp.float32(N)
    return logits, loss


if __name__ == "__main__":
    # Small, TPU-friendly shapes: vocab=128 (lane-aligned), batch=2, seq=8.
    V, B, T = 128, 2, 8
    key = jax.random.PRNGKey(0)
    k_tab, k_idx, k_tgt = jax.random.split(key, 3)

    table = jax.random.normal(k_tab, (V, V), jnp.float32)   # nn.Embedding ~ N(0,1)
    idx = jax.random.randint(k_idx, (B, T), 0, V, jnp.int32)
    targets = jax.random.randint(k_tgt, (B, T), 0, V, jnp.int32)

    logits, loss = bigram_forward(idx, table, targets)
    logits, loss = jax.block_until_ready((logits, loss))

    # Pure-JAX reference check.
    N = B * T
    ref_logits = table[idx].reshape(N, V)
    ref_lse = jax.nn.logsumexp(ref_logits, axis=-1)
    ref_loss = jnp.mean(ref_lse - ref_logits[jnp.arange(N), targets.reshape(-1)])
    assert logits.shape == (N, V)
    assert jnp.allclose(logits, ref_logits, atol=1e-6), "logits mismatch"
    assert jnp.allclose(loss, ref_loss, atol=1e-5), "loss mismatch"

    # targets=None (inference) path: gather only, (B, T, V) logits, loss=None.
    logits_nt, loss_nt = bigram_forward(idx, table, None)
    logits_nt = jax.block_until_ready(logits_nt)
    assert loss_nt is None and logits_nt.shape == (B, T, V)
    assert jnp.allclose(logits_nt, table[idx], atol=1e-6), "inference logits mismatch"

    # TODO(synk): generate() (autoregressive torch.multinomial sampling loop) is a
    # host-side loop around this forward and is intentionally not a kernel.
    print("KERNEL_OK")
</pallas_src>

<mosaic_0001>
module attributes {stable_mosaic.version = 11 : i64} {
  func.func @_bigram_ce_kernel(%arg0: i32, %arg1: memref<16xi32, #tpu.memory_space<smem>>, %arg2: memref<16x1xi32, #tpu.memory_space<vmem>>, %arg3: memref<128x128xf32, #tpu.memory_space<vmem>>, %arg4: memref<16x128xf32, #tpu.memory_space<vmem>>, %arg5: memref<1x1x1xf32, #tpu.memory_space<vmem>>) attributes {dimension_semantics = [#tpu.dimension_semantics<parallel>], iteration_bounds = array<i64: 1>, scalar_prefetch = 1 : i64, scratch_operands = 0 : i64, tpu.core_type = #tpu.core_type<tc>, window_params = [{transform_indices = @transform_0, window_bounds = array<i64: 16, 1>}, {pipeline_mode = #tpu.pipeline_mode<synchronous>, transform_indices = @transform_1, window_bounds = array<i64: 128, 128>}, {transform_indices = @transform_2, window_bounds = array<i64: 16, 128>}, {transform_indices = @transform_3, window_bounds = array<i64: 1, 1, 1>}]} {
    %c16_i32 = arith.constant 16 : i32
    %0 = arith.muli %arg0, %c16_i32 : i32
    %c16_i32_0 = arith.constant 16 : i32
    %1 = arith.muli %arg0, %c16_i32_0 : i32
    %c0_i32 = arith.constant 0 : i32
    %2 = arith.addi %1, %c0_i32 : i32
    %3 = arith.index_cast %2 : i32 to index
    %4 = memref.load %arg1[%3] : memref<16xi32, #tpu.memory_space<smem>>
    %5 = arith.index_cast %4 : i32 to index
    %c0 = arith.constant 0 : index
    %6 = vector.load %arg3[%5, %c0] : memref<128x128xf32, #tpu.memory_space<vmem>>, vector<1x128xf32>
    %c0_1 = arith.constant 0 : index
    %c0_2 = arith.constant 0 : index
    %7 = vector.load %arg4[%c0_1, %c0_2] : memref<16x128xf32, #tpu.memory_space<vmem>>, vector<1x128xf32>
    tpu.vector_store %arg4[%c0_1, %c0_2], %6 {strides = array<i32>} : memref<16x128xf32, #tpu.memory_space<vmem>>, vector<1x128xf32>,
    %c1_i32 = arith.constant 1 : i32
    %8 = arith.addi %1, %c1_i32 : i32
    %9 = arith.index_cast %8 : i32 to index
    %10 = memref.load %arg1[%9] : memref<16xi32, #tpu.memory_space<smem>>
    %11 = arith.index_cast %10 : i32 to index
    %c0_3 = arith.constant 0 : index
    %12 = vector.load %arg3[%11, %c0_3] : memref<128x128xf32, #tpu.memory_space<vmem>>, vector<1x128xf32>
    %c1 = arith.constant 1 : index
    %c0_4 = arith.constant 0 : index
    %13 = vector.load %arg4[%c1, %c0_4] : memref<16x128xf32, #tpu.memory_space<vmem>>, vector<1x128xf32>
    tpu.vector_store %arg4[%c1, %c0_4], %12 {strides = array<i32>} : memref<16x128xf32, #tpu.memory_space<vmem>>, vector<1x128xf32>,
    %c2_i32 = arith.constant 2 : i32
    %14 = arith.addi %1, %c2_i32 : i32
    %15 = arith.index_cast %14 : i32 to index
    %16 = memref.load %arg1[%15] : memref<16xi32, #tpu.memory_space<smem>>
    %17 = arith.index_cast %16 : i32 to index
    %c0_5 = arith.constant 0 : index
    %18 = vector.load %arg3[%17, %c0_5] : memref<128x128xf32, #tpu.memory_space<vmem>>, vector<1x128xf32>
    %c2 = arith.constant 2 : index
    %c0_6 = arith.constant 0 : index
    %19 = vector.load %arg4[%c2, %c0_6] : memref<16x128xf32, #tpu.memory_space<vmem>>, vector<1x128xf32>
    tpu.vector_store %arg4[%c2, %c0_6], %18 {strides = array<i32>} : memref<16x128xf32, #tpu.memory_space<vmem>>, vector<1x128xf32>,
    %c3_i32 = arith.constant 3 : i32
    %20 = arith.addi %1, %c3_i32 : i32
    %21 = arith.index_cast %20 : i32 to index
    %22 = memref.load %arg1[%21] : memref<16xi32, #tpu.memory_space<smem>>
    %23 = arith.index_cast %22 : i32 to index
    %c0_7 = arith.constant 0 : index
    %24 = vector.load %arg3[%23, %c0_7] : memref<128x128xf32, #tpu.memory_space<vmem>>, vector<1x128xf32>
    %c3 = arith.constant 3 : index
    %c0_8 = arith.constant 0 : index
    %25 = vector.load %arg4[%c3, %c0_8] : memref<16x128xf32, #tpu.memory_space<vmem>>, vector<1x128xf32>
    tpu.vector_store %arg4[%c3, %c0_8], %24 {strides = array<i32>} : memref<16x128xf32, #tpu.memory_space<vmem>>, vector<1x128xf32>,
    %c4_i32 = arith.constant 4 : i32
    %26 = arith.addi %1, %c4_i32 : i32
    %27 = arith.index_cast %26 : i32 to index
    %28 = memref.load %arg1[%27] : memref<16xi32, #tpu.memory_space<smem>>
    %29 = arith.index_cast %28 : i32 to index
    %c0_9 = arith.constant 0 : index
    %30 = vector.load %arg3[%29, %c0_9] : memref<128x128xf32, #tpu.memory_space<vmem>>, vector<1x128xf32>
    %c4 = arith.constant 4 : index
    %c0_10 = arith.constant 0 : index
    %31 = vector.load %arg4[%c4, %c0_10] : memref<16x128xf32, #tpu.memory_space<vmem>>, vector<1x128xf32>
    tpu.vector_store %arg4[%c4, %c0_10], %30 {strides = array<i32>} : memref<16x128xf32, #tpu.memory_space<vmem>>, vector<1x128xf32>,
    %c5_i32 = arith.constant 5 : i32
    %32 = arith.addi %1, %c5_i32 : i32
    %33 = arith.index_cast %32 : i32 to index
    %34 = memref.load %arg1[%33] : memref<16xi32, #tpu.memory_space<smem>>
    %35 = arith.index_cast %34 : i32 to index
    %c0_11 = arith.constant 0 : index
    %36 = vector.load %arg3[%35, %c0_11] : memref<128x128xf32, #tpu.memory_space<vmem>>, vector<1x128xf32>
    %c5 = arith.constant 5 : index
    %c0_12 = arith.constant 0 : index
    %37 = vector.load %arg4[%c5, %c0_12] : memref<16x128xf32, #tpu.memory_space<vmem>>, vector<1x128xf32>
    tpu.vector_store %arg4[%c5, %c0_12], %36 {strides = array<i32>} : memref<16x128xf32, #tpu.memory_space<vmem>>, vector<1x128xf32>,
    %c6_i32 = arith.constant 6 : i32
    %38 = arith.addi %1, %c6_i32 : i32
    %39 = arith.index_cast %38 : i32 to index
    %40 = memref.load %arg1[%39] : memref<16xi32, #tpu.memory_space<smem>>
    %41 = arith.index_cast %40 : i32 to index
    %c0_13 = arith.constant 0 : index
    %42 = vector.load %arg3[%41, %c0_13] : memref<128x128xf32, #tpu.memory_space<vmem>>, vector<1x128xf32>
    %c6 = arith.constant 6 : index
    %c0_14 = arith.constant 0 : index
    %43 = vector.load %arg4[%c6, %c0_14] : memref<16x128xf32, #tpu.memory_space<vmem>>, vector<1x128xf32>
    tpu.vector_store %arg4[%c6, %c0_14], %42 {strides = array<i32>} : memref<16x128xf32, #tpu.memory_space<vmem>>, vector<1x128xf32>,
    %c7_i32 = arith.constant 7 : i32
    %44 = arith.addi %1, %c7_i32 : i32
    %45 = arith.index_cast %44 : i32 to index
    %46 = memref.load %arg1[%45] : memref<16xi32, #tpu.memory_space<smem>>
    %47 = arith.index_cast %46 : i32 to index
    %c0_15 = arith.constant 0 : index
    %48 = vector.load %arg3[%47, %c0_15] : memref<128x128xf32, #tpu.memory_space<vmem>>, vector<1x128xf32>
    %c7 = arith.constant 7 : index
    %c0_16 = arith.constant 0 : index
    %49 = vector.load %arg4[%c7, %c0_16] : memref<16x128xf32, #tpu.memory_space<vmem>>, vector<1x128xf32>
    tpu.vector_store %arg4[%c7, %c0_16], %48 {strides = array<i32>} : memref<16x128xf32, #tpu.memory_space<vmem>>, vector<1x128xf32>,
    %c8_i32 = arith.constant 8 : i32
    %50 = arith.addi %1, %c8_i32 : i32
    %51 = arith.index_cast %50 : i32 to index
    %52 = memref.load %arg1[%51] : memref<16xi32, #tpu.memory_space<smem>>
    %53 = arith.index_cast %52 : i32 to index
    %c0_17 = arith.constant 0 : index
    %54 = vector.load %arg3[%53, %c0_17] : memref<128x128xf32, #tpu.memory_space<vmem>>, vector<1x128xf32>
    %c8 = arith.constant 8 : index
    %c0_18 = arith.constant 0 : index
    %55 = vector.load %arg4[%c8, %c0_18] : memref<16x128xf32, #tpu.memory_space<vmem>>, vector<1x128xf32>
    tpu.vector_store %arg4[%c8, %c0_18], %54 {strides = array<i32>} : memref<16x128xf32, #tpu.memory_space<vmem>>, vector<1x128xf32>,
    %c9_i32 = arith.constant 9 : i32
    %56 = arith.addi %1, %c9_i32 : i32
    %57 = arith.index_cast %56 : i32 to index
    %58 = memref.load %arg1[%57] : memref<16xi32, #tpu.memory_space<smem>>
    %59 = arith.index_cast %58 : i32 to index
    %c0_19 = arith.constant 0 : index
    %60 = vector.load %arg3[%59, %c0_19] : memref<128x128xf32, #tpu.memory_space<vmem>>, vector<1x128xf32>
    %c9 = arith.constant 9 : index
    %c0_20 = arith.constant 0 : index
    %61 = vector.load %arg4[%c9, %c0_20] : memref<16x128xf32, #tpu.memory_space<vmem>>, vector<1x128xf32>
    tpu.vector_store %arg4[%c9, %c0_20], %60 {strides = array<i32>} : memref<16x128xf32, #tpu.memory_space<vmem>>, vector<1x128xf32>,
    %c10_i32 = arith.constant 10 : i32
    %62 = arith.addi %1, %c10_i32 : i32
    %63 = arith.index_cast %62 : i32 to index
    %64 = memref.load %arg1[%63] : memref<16xi32, #tpu.memory_space<smem>>
    %65 = arith.index_cast %64 : i32 to index
    %c0_21 = arith.constant 0 : index
    %66 = vector.load %arg3[%65, %c0_21] : memref<128x128xf32, #tpu.memory_space<vmem>>, vector<1x128xf32>
    %c10 = arith.constant 10 : index
    %c0_22 = arith.constant 0 : index
    %67 = vector.load %arg4[%c10, %c0_22] : memref<16x128xf32, #tpu.memory_space<vmem>>, vector<1x128xf32>
    tpu.vector_store %arg4[%c10, %c0_22], %66 {strides = array<i32>} : memref<16x128xf32, #tpu.memory_space<vmem>>, vector<1x128xf32>,
    %c11_i32 = arith.constant 11 : i32
    %68 = arith.addi %1, %c11_i32 : i32
    %69 = arith.index_cast %68 : i32 to index
    %70 = memref.load %arg1[%69] : memref<16xi32, #tpu.memory_space<smem>>
    %71 = arith.index_cast %70 : i32 to index
    %c0_23 = arith.constant 0 : index
    %72 = vector.load %arg3[%71, %c0_23] : memref<128x128xf32, #tpu.memory_space<vmem>>, vector<1x128xf32>
    %c11 = arith.constant 11 : index
    %c0_24 = arith.constant 0 : index
    %73 = vector.load %arg4[%c11, %c0_24] : memref<16x128xf32, #tpu.memory_space<vmem>>, vector<1x128xf32>
    tpu.vector_store %arg4[%c11, %c0_24], %72 {strides = array<i32>} : memref<16x128xf32, #tpu.memory_space<vmem>>, vector<1x128xf32>,
    %c12_i32 = arith.constant 12 : i32
    %74 = arith.addi %1, %c12_i32 : i32
    %75 = arith.index_cast %74 : i32 to index
    %76 = memref.load %arg1[%75] : memref<16xi32, #tpu.memory_space<smem>>
    %77 = arith.index_cast %76 : i32 to index
    %c0_25 = arith.constant 0 : index
    %78 = vector.load %arg3[%77, %c0_25] : memref<128x128xf32, #tpu.memory_space<vmem>>, vector<1x128xf32>
    %c12 = arith.constant 12 : index
    %c0_26 = arith.constant 0 : index
    %79 = vector.load %arg4[%c12, %c0_26] : memref<16x128xf32, #tpu.memory_space<vmem>>, vector<1x128xf32>
    tpu.vector_store %arg4[%c12, %c0_26], %78 {strides = array<i32>} : memref<16x128xf32, #tpu.memory_space<vmem>>, vector<1x128xf32>,
    %c13_i32 = arith.constant 13 : i32
    %80 = arith.addi %1, %c13_i32 : i32
    %81 = arith.index_cast %80 : i32 to index
    %82 = memref.load %arg1[%81] : memref<16xi32, #tpu.memory_space<smem>>
    %83 = arith.index_cast %82 : i32 to index
    %c0_27 = arith.constant 0 : index
    %84 = vector.load %arg3[%83, %c0_27] : memref<128x128xf32, #tpu.memory_space<vmem>>, vector<1x128xf32>
    %c13 = arith.constant 13 : index
    %c0_28 = arith.constant 0 : index
    %85 = vector.load %arg4[%c13, %c0_28] : memref<16x128xf32, #tpu.memory_space<vmem>>, vector<1x128xf32>
    tpu.vector_store %arg4[%c13, %c0_28], %84 {strides = array<i32>} : memref<16x128xf32, #tpu.memory_space<vmem>>, vector<1x128xf32>,
    %c14_i32 = arith.constant 14 : i32
    %86 = arith.addi %1, %c14_i32 : i32
    %87 = arith.index_cast %86 : i32 to index
    %88 = memref.load %arg1[%87] : memref<16xi32, #tpu.memory_space<smem>>
    %89 = arith.index_cast %88 : i32 to index
    %c0_29 = arith.constant 0 : index
    %90 = vector.load %arg3[%89, %c0_29] : memref<128x128xf32, #tpu.memory_space<vmem>>, vector<1x128xf32>
    %c14 = arith.constant 14 : index
    %c0_30 = arith.constant 0 : index
    %91 = vector.load %arg4[%c14, %c0_30] : memref<16x128xf32, #tpu.memory_space<vmem>>, vector<1x128xf32>
    tpu.vector_store %arg4[%c14, %c0_30], %90 {strides = array<i32>} : memref<16x128xf32, #tpu.memory_space<vmem>>, vector<1x128xf32>,
    %c15_i32 = arith.constant 15 : i32
    %92 = arith.addi %1, %c15_i32 : i32
    %93 = arith.index_cast %92 : i32 to index
    %94 = memref.load %arg1[%93] : memref<16xi32, #tpu.memory_space<smem>>
    %95 = arith.index_cast %94 : i32 to index
    %c0_31 = arith.constant 0 : index
    %96 = vector.load %arg3[%95, %c0_31] : memref<128x128xf32, #tpu.memory_space<vmem>>, vector<1x128xf32>
    %c15 = arith.constant 15 : index
    %c0_32 = arith.constant 0 : index
    %97 = vector.load %arg4[%c15, %c0_32] : memref<16x128xf32, #tpu.memory_space<vmem>>, vector<1x128xf32>
    tpu.vector_store %arg4[%c15, %c0_32], %96 {strides = array<i32>} : memref<16x128xf32, #tpu.memory_space<vmem>>, vector<1x128xf32>,
    %c0_33 = arith.constant 0 : index
    %c0_34 = arith.constant 0 : index
    %98 = vector.load %arg4[%c0_33, %c0_34] : memref<16x128xf32, #tpu.memory_space<vmem>>, vector<16x128xf32>
    %cst = arith.constant dense<0xFF800000> : vector<16xf32>
    %99 = vector.multi_reduction <maximumf>, %98, %cst [1] : vector<16x128xf32> to vector<16xf32>
    %100 = vector.shape_cast %99 : vector<16xf32> to vector<16x1xf32>
    %101 = vector.broadcast %100 : vector<16x1xf32> to vector<16x128xf32>
    %102 = arith.subf %98, %101 : vector<16x128xf32>
    %103 = math.exp %102 : vector<16x128xf32>
    %cst_35 = arith.constant dense<0.000000e+00> : vector<16xf32>
    %104 = vector.multi_reduction <add>, %103, %cst_35 [1] : vector<16x128xf32> to vector<16xf32>
    %105 = vector.shape_cast %104 : vector<16xf32> to vector<16x1xf32>
    %106 = math.log %105 : vector<16x1xf32>
    %107 = arith.addf %100, %106 : vector<16x1xf32>
    %108 = tpu.iota {dimensions = array<i32: 1>} : vector<16x128xi32>
    %c0_36 = arith.constant 0 : index
    %c0_37 = arith.constant 0 : index
    %109 = vector.load %arg2[%c0_36, %c0_37] : memref<16x1xi32, #tpu.memory_space<vmem>>, vector<16x1xi32>
    %110 = vector.broadcast %109 : vector<16x1xi32> to vector<16x128xi32>
    %111 = arith.cmpi eq, %108, %110 : vector<16x128xi32>
    %cst_38 = arith.constant 0.000000e+00 : f32
    %112 = vector.broadcast %cst_38 : f32 to vector<16x128xf32>
    %113 = arith.select %111, %98, %112 : vector<16x128xi1>, vector<16x128xf32>
    %cst_39 = arith.constant dense<0.000000e+00> : vector<16xf32>
    %114 = vector.multi_reduction <add>, %113, %cst_39 [1] : vector<16x128xf32> to vector<16xf32>
    %115 = vector.shape_cast %114 : vector<16xf32> to vector<16x1xf32>
    %116 = arith.subf %107, %115 : vector<16x1xf32>
    %117 = tpu.iota {dimensions = array<i32: 0>} : vector<16x1xi32>
    %118 = vector.broadcast %0 : i32 to vector<16x1xi32>
    %119 = arith.addi %118, %117 : vector<16x1xi32>
    %c16_i32_40 = arith.constant 16 : i32
    %120 = vector.broadcast %c16_i32_40 : i32 to vector<16x1xi32>
    %121 = arith.cmpi slt, %119, %120 : vector<16x1xi32>
    %cst_41 = arith.constant 0.000000e+00 : f32
    %122 = vector.broadcast %cst_41 : f32 to vector<16x1xf32>
    %123 = arith.select %121, %116, %122 : vector<16x1xi1>, vector<16x1xf32>
    %124 = vector.shape_cast %123 : vector<16x1xf32> to vector<1x16x1xf32>
    %cst_42 = arith.constant dense<0.000000e+00> : vector<1xf32>
    %125 = vector.multi_reduction <add>, %124, %cst_42 [1, 2] : vector<1x16x1xf32> to vector<1xf32>
    %126 = vector.shape_cast %125 : vector<1xf32> to vector<1x1x1xf32>
    %127 = vector.extract %126[0, 0, 0] : f32 from vector<1x1x1xf32>
    %128 = vector.broadcast %127 : f32 to vector<1x1x1xf32>
    %c0_43 = arith.constant 0 : index
    %c0_44 = arith.constant 0 : index
    %c0_45 = arith.constant 0 : index
    %129 = vector.load %arg5[%c0_43, %c0_44, %c0_45] : memref<1x1x1xf32, #tpu.memory_space<vmem>>, vector<1x1x1xf32>
    tpu.vector_store %arg5[%c0_43, %c0_44, %c0_45], %128 {strides = array<i32>} : memref<1x1x1xf32, #tpu.memory_space<vmem>>, vector<1x1x1xf32>,
    return
  }
  func.func @transform_0(%arg0: i32, %arg1: memref<16xi32, #tpu.memory_space<smem>>) -> (i32, i32) {
    %c0_i32 = arith.constant 0 : i32
    %c0_i32_0 = arith.constant 0 : i32
    return %arg0, %c0_i32 : i32, i32
  }
  func.func @transform_1(%arg0: i32, %arg1: memref<16xi32, #tpu.memory_space<smem>>) -> (i32, i32) {
    %c0_i32 = arith.constant 0 : i32
    %c0_i32_0 = arith.constant 0 : i32
    %c0_i32_1 = arith.constant 0 : i32
    return %c0_i32, %c0_i32_0 : i32, i32
  }
  func.func @transform_2(%arg0: i32, %arg1: memref<16xi32, #tpu.memory_space<smem>>) -> (i32, i32) {
    %c0_i32 = arith.constant 0 : i32
    %c0_i32_0 = arith.constant 0 : i32
    return %arg0, %c0_i32 : i32, i32
  }
  func.func @transform_3(%arg0: i32, %arg1: memref<16xi32, #tpu.memory_space<smem>>) -> (i32, i32, i32) {
    %c0_i32 = arith.constant 0 : i32
    %c0_i32_0 = arith.constant 0 : i32
    %c0_i32_1 = arith.constant 0 : i32
    return %arg0, %c0_i32, %c0_i32_0 : i32, i32, i32
  }
}

</mosaic_0001>

<llo_original>
// kernel: tpu_custom_call.1
$region0: #{tpu_custom_call.1}
  #allocation0 [shape = 'u32[]', space=smem, size = 0x4, offset = 0x4, fixed_abs, tag = 'smem constant byte address 0x4 - core index']
  #allocation1 [shape = 'u32[144,128]{1,0:T(1,128)}', space=vmem, size = 0x12000, scoped, tag = 'internal scratch']
  #allocation2 [shape = 's32[1]{0}', space=sflag, size = 0x4, scoped, tag = 'scoped memory for tpu_custom_call.1']
  #allocation3 [shape = 'u8[512]{0}', space=smem, size = 0x200, scoped, tag = 'prefetched SMEM operand 0']
  %s0 = inlined_call_operand.vmem [shape: s32[16], index: 0, kind: input, shape index: {}]
  %s1 = inlined_call_operand.vmem [shape: s32[16,1], index: 1, kind: input, shape index: {}]
  %s2 = inlined_call_operand.hbm [shape: f32[128,128], index: 2, kind: input, shape index: {}]
  %s3 = inlined_call_operand.hbm [shape: f32[16,128], index: 3, kind: output, shape index: {0}]
  %s4 = inlined_call_operand.hbm [shape: f32[1,1,1], index: 4, kind: output, shape index: {1}]
  %5 = xla_tuple %s3, %s4
  %s6 = sld [smem:[#allocation0]]
  $region30: #{tpu_custom_call.1} parent=0
    _
  %s8 = ssub.s32 1, %s6
  %s9 = scalar_select 0, %s8, %s6
  %s10 = sshll.u32 %s0, 4
  %s11 = int_to_ptr.vmem [resolvable:$true] %s10
  %13 = dma.vmem_to_smem %s11, 16, [#allocation3], [#allocation2]
  %14 = dma.done [#allocation2], 16
  %15 = sfence
  $region1: #{tpu_custom_call.1} parent=0
    #allocation4 [shape = 'u8[65536]{0}', space=vmem, size = 0x10000, scoped, tag = 'input window, operand 2, single buffered']
    #allocation5 [shape = 's32[1]{0}', space=sflag, size = 0x4, scoped, tag = 'scoped memory for tpu_custom_call.1']
    #allocation6 [shape = 's32[1]{0}', space=sflag, size = 0x4, scoped, tag = 'scoped memory for tpu_custom_call.1']
    #allocation7 [shape = 'u8[8192]{0}', space=vmem, size = 0x2000, scoped, tag = 'output window, operand 0, single buffered']
    #allocation8 [shape = 'u8[512]{0}', space=vmem, size = 0x400, scoped, tag = 'output window, operand 1, single buffered']
    #allocation9 [shape = 's32[1]{0}', space=sflag, size = 0x4, scoped, tag = 'scoped memory for tpu_custom_call.1']
    %16 = vsyncpa [#allocation5], 0
    %17 = vsyncpa [#allocation6], 0
    %18 = vsyncpa [#allocation9], 0
    // Predicated region
    $region2: #{tpu_custom_call.1} parent=1 // pred_check
      _
    $region3: #{tpu_custom_call.1} parent=1 // pred_check_branch
      %20 = sbr.rel (0) target = $region5
    $region4: #{tpu_custom_call.1} parent=1 // pred_region
      _
    $region5: #{tpu_custom_call.1} parent=1 // pred_fallthru
      _
    // Predicated region
    $region6: #{tpu_custom_call.1} parent=1 // pred_check
      _
    $region7: #{tpu_custom_call.1} parent=1 // pred_check_branch
      %22 = sbr.rel (0) target = $region9
    $region8: #{tpu_custom_call.1} parent=1 // pred_region
      %s24 = ssub.s32 2048, 2048
      %25 = vsyncadd [#allocation5], %s24
      %s26 = sshll.u32 [#allocation4], 4
      %s27 = int_to_ptr.vmem [resolvable:$true] %s26
      %32 = dma.hbm_to_vmem [thread:$0]  %s2, 2048, %s27, [#allocation5], 128, 128, 8
    $region9: #{tpu_custom_call.1} parent=1 // pred_fallthru
      _
    // Predicated region
    $region10: #{tpu_custom_call.1} parent=1 // pred_check
      _
    $region11: #{tpu_custom_call.1} parent=1 // pred_check_branch
      %34 = sbr.rel (0) target = $region13
    $region12: #{tpu_custom_call.1} parent=1 // pred_region
      %35 = dma.done [#allocation5], 2048
    $region13: #{tpu_custom_call.1} parent=1 // pred_fallthru
      _
    %s36 = smul.u32 0, 16
    %s37 = sld [smem:[#allocation3 + %s36]]
    %s38 = scalar_lea.vmem [#allocation4], %s37
    %v39 = vld [vmem:[%s38] sm:$0x1]
    %40 = vst [vmem:[#allocation7] sm:$0x1] %v39
    %s41 = sadd.s32 %s36, 1
    %s42 = sld [smem:[#allocation3 + %s41]]
    %s43 = scalar_lea.vmem [#allocation4], %s42
    %v44 = vld [vmem:[%s43] sm:$0x1]
    %45 = vst [vmem:[#allocation7 + $0x1] sm:$0x1] %v44
    %s46 = sadd.s32 %s36, 2
    %s47 = sld [smem:[#allocation3 + %s46]]
    %s48 = scalar_lea.vmem [#allocation4], %s47
    %v49 = vld [vmem:[%s48] sm:$0x1]
    %50 = vst [vmem:[#allocation7 + $0x2] sm:$0x1] %v49
    %s51 = sadd.s32 %s36, 3
    %s52 = sld [smem:[#allocation3 + %s51]]
    %s53 = scalar_lea.vmem [#allocation4], %s52
    %v54 = vld [vmem:[%s53] sm:$0x1]
    %55 = vst [vmem:[#allocation7 + $0x3] sm:$0x1] %v54
    %s56 = sadd.s32 %s36, 4
    %s57 = sld [smem:[#allocation3 + %s56]]
    %s58 = scalar_lea.vmem [#allocation4], %s57
    %v59 = vld [vmem:[%s58] sm:$0x1]
    %60 = vst [vmem:[#allocation7 + $0x4] sm:$0x1] %v59
    %s61 = sadd.s32 %s36, 5
    %s62 = sld [smem:[#allocation3 + %s61]]
    %s63 = scalar_lea.vmem [#allocation4], %s62
    %v64 = vld [vmem:[%s63] sm:$0x1]
    %65 = vst [vmem:[#allocation7 + $0x5] sm:$0x1] %v64
    %s66 = sadd.s32 %s36, 6
    %s67 = sld [smem:[#allocation3 + %s66]]
    %s68 = scalar_lea.vmem [#allocation4], %s67
    %v69 = vld [vmem:[%s68] sm:$0x1]
    %70 = vst [vmem:[#allocation7 + $0x6] sm:$0x1] %v69
    %s71 = sadd.s32 %s36, 7
    %s72 = sld [smem:[#allocation3 + %s71]]
    %s73 = scalar_lea.vmem [#allocation4], %s72
    %v74 = vld [vmem:[%s73] sm:$0x1]
    %75 = vst [vmem:[#allocation7 + $0x7] sm:$0x1] %v74
    %s76 = sadd.s32 %s36, 8
    %s77 = sld [smem:[#allocation3 + %s76]]
    %s78 = scalar_lea.vmem [#allocation4], %s77
    %v79 = vld [vmem:[%s78] sm:$0x1]
    %80 = vst [vmem:[#allocation7 + $0x8] sm:$0x1] %v79
    %s81 = sadd.s32 %s36, 9
    %s82 = sld [smem:[#allocation3 + %s81]]
    %s83 = scalar_lea.vmem [#allocation4], %s82
    %v84 = vld [vmem:[%s83] sm:$0x1]
    %85 = vst [vmem:[#allocation7 + $0x9] sm:$0x1] %v84
    %s86 = sadd.s32 %s36, 10
    %s87 = sld [smem:[#allocation3 + %s86]]
    %s88 = scalar_lea.vmem [#allocation4], %s87
    %v89 = vld [vmem:[%s88] sm:$0x1]
    %90 = vst [vmem:[#allocation7 + $0xa] sm:$0x1] %v89
    %s91 = sadd.s32 %s36, 11
    %s92 = sld [smem:[#allocation3 + %s91]]
    %s93 = scalar_lea.vmem [#allocation4], %s92
    %v94 = vld [vmem:[%s93] sm:$0x1]
    %95 = vst [vmem:[#allocation7 + $0xb] sm:$0x1] %v94
    %s96 = sadd.s32 %s36, 12
    %s97 = sld [smem:[#allocation3 + %s96]]
    %s98 = scalar_lea.vmem [#allocation4], %s97
    %v99 = vld [vmem:[%s98] sm:$0x1]
    %100 = vst [vmem:[#allocation7 + $0xc] sm:$0x1] %v99
    %s101 = sadd.s32 %s36, 13
    %s102 = sld [smem:[#allocation3 + %s101]]
    %s103 = scalar_lea.vmem [#allocation4], %s102
    %v104 = vld [vmem:[%s103] sm:$0x1]
    %105 = vst [vmem:[#allocation7 + $0xd] sm:$0x1] %v104
    %s106 = sadd.s32 %s36, 14
    %s107 = sld [smem:[#allocation3 + %s106]]
    %s108 = scalar_lea.vmem [#allocation4], %s107
    %v109 = vld [vmem:[%s108] sm:$0x1]
    %110 = vst [vmem:[#allocation7 + $0xe] sm:$0x1] %v109
    %s111 = sadd.s32 %s36, 15
    %s112 = sld [smem:[#allocation3 + %s111]]
    %s113 = scalar_lea.vmem [#allocation4], %s112
    %v114 = vld [vmem:[%s113] sm:$0x1]
    %115 = vst [vmem:[#allocation7 + $0xf] sm:$0x1] %v114
    %v116 = vld [vmem:[#allocation7] sm:$0xff]
    %v117 = vld [vmem:[#allocation7 + $0x8] sm:$0xff]
    %118 = vmax.xlane.f32.xlu0 %v116
    %v119 = vpop.xlane.xlu0 %118
    %120 = vmax.xlane.f32.xlu0 %v117
    %v121 = vpop.xlane.xlu0 %120
    %v122 = vsub.f32 %v116, %v119
    %v123 = vsub.f32 %v117, %v121
    %v124 = vmul.f32 %v122, 1.442695
    %v125 = vpow.pop %v124
    %v126 = vmul.f32 %v123, 1.442695
    %v127 = vpow.pop %v126
    %128 = vadd.xlane.f32.xlu0 %v125
    %v129 = vpop.xlane.xlu0 %128
    %130 = vadd.xlane.f32.xlu0 %v127
    %v131 = vpop.xlane.xlu0 %130
    %v132 = vlog2.pop %v129
    %v133 = vmul.f32 %v132, 0.6931472
    %v134 = vlog2.pop %v131
    %v135 = vmul.f32 %v134, 0.6931472
    %v136 = vadd.f32 %v119, %v133
    %v137 = vadd.f32 %v121, %v135
    %v138 = vlaneseq
    %v139 = vand.u32 %v138, 127
    %v140 = vld [vmem:[%s1] sm:$0xff]
    %v141 = vld [vmem:[%s1 + $0x8] sm:$0xff]
    %142 = vset.pattern.permute.xlu0 0
    %143 = vperm.xlu0 %142, %v140
    %v144 = vpop.permute.xlu0 %143
    %145 = vset.pattern.permute.xlu0 0
    %146 = vperm.xlu0 %145, %v141
    %v147 = vpop.permute.xlu0 %146
    %vm148 = vcmp.eq.s32.totalorder %v139, %v144
    %vm149 = vcmp.eq.s32.totalorder %v139, %v147
    %v150 = vsel %vm148, %v116, 0.0
    %v151 = vsel %vm149, %v117, 0.0
    %152 = vadd.xlane.f32.xlu0 %v150
    %v153 = vpop.xlane.xlu0 %152
    %154 = vadd.xlane.f32.xlu0 %v151
    %v155 = vpop.xlane.xlu0 %154
    %v156 = vsub.f32 %v136, %v153
    %v157 = vsub.f32 %v137, %v155
    %v158 = vlaneseq
    %v159 = vshrl.u32 %v158, 7
    %v160 = vadd.s32 %v159, 8
    %v161 = vstv %s36
    %v162 = vadd.s32 %v161, %v159
    %v163 = vadd.s32 %v161, %v160
    %vm164 = vcmp.lt.s32.totalorder %v162, 16
    %vm165 = vcmp.lt.s32.totalorder %v163, 16
    %v166 = vsel %vm164, %v156, 0.0
    %v167 = vsel %vm165, %v157, 0.0
    %vm168 = vcmask 7168
    %v169 = vsel %vm168, %v166, 0.0
    %v170 = vsel %vm168, %v167, 0.0
    %v171 = vadd.f32 %v169, %v170
    %172 = vadd.xlane.f32.xlu0 %v171
    %v173 = vpop.xlane.xlu0 %172
    %v174 = vrot.slane %v173, 4
    %v175 = vadd.f32 %v173, %v174
    %v176 = vrot.slane %v175, 2
    %v177 = vadd.f32 %v175, %v176
    %v178 = vrot.slane %v177, 1
    %v179 = vadd.f32 %v177, %v178
    %s180 = vtos %v179
    %v181 = vstv %s180
    %vm182 = vcmask 0
    %183 = vst.msk [vmem:[#allocation8] sm:$0x1] %vm182, %v181
    // Predicated region
    $region14: #{tpu_custom_call.1} parent=1 // pred_check
      _
    $region15: #{tpu_custom_call.1} parent=1 // pred_check_branch
      %185 = sbr.rel (0) target = $region17
    $region16: #{tpu_custom_call.1} parent=1 // pred_region
      %s187 = ssub.s32 256, 256
      %188 = vsyncadd [#allocation6], %s187
      %s189 = sshll.u32 [#allocation7], 4
      %s190 = int_to_ptr.vmem [resolvable:$true] %s189
      %195 = dma.vmem_to_hbm [thread:$0]  %s190, 256, %s3, [#allocation6], 128, 128, 8
    $region17: #{tpu_custom_call.1} parent=1 // pred_fallthru
      _
    // Predicated region
    $region18: #{tpu_custom_call.1} parent=1 // pred_check
      _
    $region19: #{tpu_custom_call.1} parent=1 // pred_check_branch
      %197 = sbr.rel (0) target = $region21
    $region20: #{tpu_custom_call.1} parent=1 // pred_region
      %s199 = ssub.s32 16, 16
      %200 = vsyncadd [#allocation9], %s199
      %s202 = sshll.u32 [#allocation8], 4
      %s203 = int_to_ptr.vmem [resolvable:$true] %s202
      %205 = dma.vmem_to_hbm [thread:$0]  %s203, 16, %s4, [#allocation9]
    $region21: #{tpu_custom_call.1} parent=1 // pred_fallthru
      _
    // Predicated region
    $region22: #{tpu_custom_call.1} parent=1 // pred_check
      _
    $region23: #{tpu_custom_call.1} parent=1 // pred_check_branch
      %207 = sbr.rel (0) target = $region25
    $region24: #{tpu_custom_call.1} parent=1 // pred_region
      %208 = dma.done [#allocation6], 256
    $region25: #{tpu_custom_call.1} parent=1 // pred_fallthru
      _
    // Predicated region
    $region26: #{tpu_custom_call.1} parent=1 // pred_check
      _
    $region27: #{tpu_custom_call.1} parent=1 // pred_check_branch
      %210 = sbr.rel (0) target = $region29
    $region28: #{tpu_custom_call.1} parent=1 // pred_region
      %211 = dma.done [#allocation9], 16
    $region29: #{tpu_custom_call.1} parent=1 // pred_fallthru
      _
    %212 = vsyncpa [#allocation5], 1
    %213 = vsyncpa [#allocation6], 1
    %214 = vsyncpa [#allocation9], 1

</llo_original>
